<compile_context>
chip_gen: v6e
topology: v6e:2x2x1
jax: 0.10.0
libtpu: 0.0.40
codegen_flags: <defaults>
</compile_context>

<pallas_src>
import functools

import jax
import jax.numpy as jnp
from jax import lax
from jax.experimental import pallas as pl
from jax.experimental.pallas import tpu as pltpu

_LANE = 128


def _l2norm_kernel(x_ref, o_ref, *, eps, block_rows, total_rows, mask_tail):
    """One (block_rows, D) row tile: o = x / max(||x||_2, eps) per row."""
    x = x_ref[...]                                            # source dtype
    if mask_tail:
        # Zero rows past the true batch size (only the last, partial block has
        # them) so the rsqrt path never sees garbage from the OOB window.
        row0 = pl.program_id(0) * block_rows
        row_ids = row0 + lax.broadcasted_iota(jnp.int32, (block_rows, 1), 0)
        x = jnp.where(row_ids < total_rows, x, jnp.zeros_like(x))

    xf = x.astype(jnp.float32)                                # live only for the reduce
    ss = jnp.sum(xf * xf, axis=-1, keepdims=True)             # [tb, 1] f32
    # 1 / max(sqrt(ss), eps) == min(rsqrt(ss), 1/eps); ss == 0 -> 1/eps -> output 0.
    inv = jnp.minimum(lax.rsqrt(ss), jnp.float32(1.0 / eps))  # per-row, EUP
    # Scale in the source dtype: no full-tile f32 copy live on the store path.
    o_ref[...] = (x * inv.astype(x.dtype)).astype(o_ref.dtype)


def _l2_normalize_xla(x, *, eps):
    xf = x.astype(jnp.float32)
    ss = jnp.sum(xf * xf, axis=1, keepdims=True)
    inv = jnp.minimum(lax.rsqrt(ss), jnp.float32(1.0 / eps))
    return (xf * inv).astype(x.dtype)


def _round_up(n, m):
    return ((n + m - 1) // m) * m


def _vmem_capacity_bytes(default=64 * 1024 * 1024):
    try:
        cap = getattr(pltpu.get_tpu_info(), "vmem_capacity_bytes", None)
        return int(cap) if cap else default
    except Exception:
        return default


def l2_normalize(x, *, eps=1e-12, block_rows=None):
    """L2-normalize a [B, D] array along dim=1 (features).

    Matches torch.nn.functional.normalize(x, p=2, dim=1, eps=eps).
    """
    B, D = x.shape
    itemsize = jnp.dtype(x.dtype).itemsize

    # Lane-sparse tiles (D < 128) waste 50-75%+ of each vreg and force masked
    # vst stores; per the perf review, let XLA fuse tiny feature dims instead.
    # TODO(synk): repack g = 128 // D rows per lane row with a segmented
    # sum-of-squares to keep small-D shapes in the Pallas path at HBM roofline.
    if D < _LANE and block_rows is None:
        return _l2_normalize_xla(x, eps=eps)

    # Sublane packing: 8 rows for 4-byte dtypes, 16 for bf16/f16, 32 for int8.
    sublane = max(8, 32 // itemsize)
    b_round = _round_up(B, sublane)
    row_bytes = D * itemsize

    if block_rows is None:
        # ~4 MiB per streaming buffer keeps the fixed ~0.35 us grid-step
        # overhead under a few % of the DMA time on v5e/v6e/v7x.
        per_buf_budget = 4 * 1024 * 1024
        block_rows = max(sublane, (per_buf_budget // row_bytes) // sublane * sublane)
        # Split into >= 4 grid steps (megacore sharding + DMA/compute overlap)
        # as long as each buffer stays >= ~2 MiB.
        min_buf = 2 * 1024 * 1024
        min_rows_for_bw = max(sublane,
                              _round_up((min_buf + row_bytes - 1) // row_bytes, sublane))
        split_rows = _round_up((B + 3) // 4, sublane)
        if split_rows >= min_rows_for_bw:
            block_rows = min(block_rows, split_rows)
    block_rows = max(sublane, _round_up(block_rows, sublane))
    block_rows = min(block_rows, b_round)

    # TODO(synk): for very wide D where even a sublane-high tile blows the VMEM
    # budget (hits first on v7x's 64 MiB), add a D-tiled reduction grid axis
    # (last, "arbitrary") with a per-row sum-of-squares VMEM scratch.

    n_blocks = pl.cdiv(B, block_rows)
    mask_tail = (B % block_rows) != 0

    block_bytes = block_rows * D * itemsize
    # 2x double-buffered input + 2x output + in-kernel f32 working set + slack.
    vmem_need = 4 * block_bytes + 2 * block_rows * D * 4 + (2 << 20)
    vmem_limit = int(min(0.75 * _vmem_capacity_bytes(), max(vmem_need, 32 << 20)))

    kernel = functools.partial(
        _l2norm_kernel, eps=float(eps), block_rows=block_rows,
        total_rows=B, mask_tail=mask_tail)

    cost = pl.CostEstimate(
        flops=3 * B * D,                       # square + reduce-add + scale
        transcendentals=B,                     # one rsqrt per row
        bytes_accessed=2 * B * D * itemsize)   # one read + one write of x

    return pl.pallas_call(
        kernel,
        out_shape=jax.ShapeDtypeStruct((B, D), x.dtype),
        grid=(n_blocks,),
        in_specs=[pl.BlockSpec((block_rows, D), lambda i: (i, 0))],
        out_specs=pl.BlockSpec((block_rows, D), lambda i: (i, 0)),
        compiler_params=pltpu.CompilerParams(
            dimension_semantics=("parallel",),
            vmem_limit_bytes=vmem_limit),
        cost_estimate=cost,
    )(x)


def l2_normalize_ref(x, *, eps=1e-12):
    # Pure-JAX reference matching torch.nn.functional.normalize(p=2, dim=1).
    xf = x.astype(jnp.float32)
    norm = jnp.sqrt(jnp.sum(xf * xf, axis=1, keepdims=True))
    return (xf / jnp.maximum(norm, eps)).astype(x.dtype)


if __name__ == "__main__":
    key = jax.random.PRNGKey(0)
    k1, k2, k3 = jax.random.split(key, 3)

    # 1) Lane-dense f32, ragged batch (B=10 not a multiple of 8): exercises the
    #    in-kernel tail mask (no pad / slice round-trips).
    B1, D1 = 10, 128
    x1 = jax.random.normal(k1, (B1, D1), dtype=jnp.float32)
    o1 = jax.block_until_ready(l2_normalize(x1))
    r1 = l2_normalize_ref(x1)
    assert o1.shape == (B1, D1) and o1.dtype == x1.dtype
    assert jnp.allclose(o1, r1, atol=1e-5, rtol=1e-5)

    # 2) bf16 activations, lane-dense, multi-step grid (block_rows forced small
    #    to exercise the pipelined multi-block path at a small shape).
    B2, D2 = 64, 256
    x2 = jax.random.normal(k2, (B2, D2), dtype=jnp.float32).astype(jnp.bfloat16)
    o2 = jax.block_until_ready(l2_normalize(x2, block_rows=16))
    r2 = l2_normalize_ref(x2)
    assert o2.shape == (B2, D2) and o2.dtype == jnp.bfloat16
    assert jnp.allclose(o2.astype(jnp.float32), r2.astype(jnp.float32),
                        atol=1e-2, rtol=1e-2)

    # 3) Tiny feature dim (D=32 < 128): lane-sparse -> XLA fallback path.
    B3, D3 = 6, 32
    x3 = jax.random.normal(k3, (B3, D3), dtype=jnp.float32)
    o3 = jax.block_until_ready(l2_normalize(x3))
    assert jnp.allclose(o3, l2_normalize_ref(x3), atol=1e-5, rtol=1e-5)

    # 4) All-zero rows: matches torch (0 / eps = 0), no NaNs (Pallas path).
    x4 = jnp.zeros((8, 128), dtype=jnp.float32)
    o4 = jax.block_until_ready(l2_normalize(x4))
    assert jnp.all(o4 == 0.0)
    assert not jnp.any(jnp.isnan(o4))

    print("KERNEL_OK")
</pallas_src>

<mosaic_0001>
module attributes {stable_mosaic.version = 11 : i64} {
  func.func @_l2norm_kernel(%arg0: i32, %arg1: memref<16x128xf32, #tpu.memory_space<vmem>>, %arg2: memref<16x128xf32, #tpu.memory_space<vmem>>) attributes {dimension_semantics = [#tpu.dimension_semantics<parallel>], iteration_bounds = array<i64: 1>, scalar_prefetch = 0 : i64, scratch_operands = 0 : i64, tpu.core_type = #tpu.core_type<tc>, window_params = [{transform_indices = @transform_0, window_bounds = array<i64: 16, 128>}, {transform_indices = @transform_1, window_bounds = array<i64: 16, 128>}]} {
    %c0 = arith.constant 0 : index
    %c0_0 = arith.constant 0 : index
    %0 = vector.load %arg1[%c0, %c0_0] : memref<16x128xf32, #tpu.memory_space<vmem>>, vector<16x128xf32>
    %c16_i32 = arith.constant 16 : i32
    %1 = arith.muli %arg0, %c16_i32 : i32
    %2 = tpu.iota {dimensions = array<i32: 0>} : vector<16x1xi32>
    %3 = vector.broadcast %1 : i32 to vector<16x1xi32>
    %4 = arith.addi %3, %2 : vector<16x1xi32>
    %c10_i32 = arith.constant 10 : i32
    %5 = vector.broadcast %c10_i32 : i32 to vector<16x1xi32>
    %6 = arith.cmpi slt, %4, %5 : vector<16x1xi32>
    %cst = arith.constant 0.000000e+00 : f32
    %7 = vector.broadcast %cst : f32 to vector<16x128xf32>
    %8 = vector.shape_cast %6 : vector<16x1xi1> to vector<16x1xi1>
    %9 = vector.broadcast %8 : vector<16x1xi1> to vector<16x128xi1>
    %10 = arith.select %9, %0, %7 : vector<16x128xi1>, vector<16x128xf32>
    %11 = arith.mulf %10, %10 : vector<16x128xf32>
    %cst_1 = arith.constant dense<0.000000e+00> : vector<16xf32>
    %12 = vector.multi_reduction <add>, %11, %cst_1 [1] : vector<16x128xf32> to vector<16xf32>
    %13 = vector.shape_cast %12 : vector<16xf32> to vector<16x1xf32>
    %14 = math.rsqrt %13 : vector<16x1xf32>
    %cst_2 = arith.constant 9.99999995E+11 : f32
    %15 = vector.broadcast %cst_2 : f32 to vector<16x1xf32>
    %16 = arith.minimumf %14, %15 : vector<16x1xf32>
    %17 = vector.broadcast %16 : vector<16x1xf32> to vector<16x128xf32>
    %18 = arith.mulf %10, %17 : vector<16x128xf32>
    %c0_3 = arith.constant 0 : index
    %c0_4 = arith.constant 0 : index
    %19 = vector.load %arg2[%c0_3, %c0_4] : memref<16x128xf32, #tpu.memory_space<vmem>>, vector<16x128xf32>
    tpu.vector_store %arg2[%c0_3, %c0_4], %18 {strides = array<i32>} : memref<16x128xf32, #tpu.memory_space<vmem>>, vector<16x128xf32>,
    return
  }
  func.func @transform_0(%arg0: i32) -> (i32, i32) {
    %c0_i32 = arith.constant 0 : i32
    %c0_i32_0 = arith.constant 0 : i32
    return %arg0, %c0_i32 : i32, i32
  }
  func.func @transform_1(%arg0: i32) -> (i32, i32) {
    %c0_i32 = arith.constant 0 : i32
    %c0_i32_0 = arith.constant 0 : i32
    return %arg0, %c0_i32 : i32, i32
  }
}

</mosaic_0001>

<llo_original>
// kernel: tpu_custom_call.1
$region0: #{tpu_custom_call.1}
  #allocation0 [shape = 'u32[]', space=smem, size = 0x4, offset = 0x4, fixed_abs, tag = 'smem constant byte address 0x4 - core index']
  #allocation1 [shape = 'u32[144,128]{1,0:T(1,128)}', space=vmem, size = 0x12000, scoped, tag = 'internal scratch']
  %s0 = inlined_call_operand.hbm [shape: f32[10,128], index: 0, kind: input, shape index: {}]
  %s1 = inlined_call_operand.hbm [shape: f32[10,128], index: 1, kind: output, shape index: {}]
  %s2 = sld [smem:[#allocation0]]
  $region18: #{tpu_custom_call.1} parent=0
    _
  %s4 = ssub.s32 1, %s2
  %s5 = scalar_select 0, %s4, %s2
  $region1: #{tpu_custom_call.1} parent=0
    #allocation2 [shape = 'u8[8192]{0}', space=vmem, size = 0x2000, scoped, tag = 'input window, operand 0, single buffered']
    #allocation3 [shape = 's32[1]{0}', space=sflag, size = 0x4, scoped, tag = 'scoped memory for tpu_custom_call.1']
    #allocation4 [shape = 's32[1]{0}', space=sflag, size = 0x4, scoped, tag = 'scoped memory for tpu_custom_call.1']
    #allocation5 [shape = 'u8[8192]{0}', space=vmem, size = 0x2000, scoped, tag = 'output window, operand 0, single buffered']
    %6 = vsyncpa [#allocation3], 0
    %7 = vsyncpa [#allocation4], 0
    // Predicated region
    $region2: #{tpu_custom_call.1} parent=1 // pred_check
      _
    $region3: #{tpu_custom_call.1} parent=1 // pred_check_branch
      %9 = sbr.rel (0) target = $region5
    $region4: #{tpu_custom_call.1} parent=1 // pred_region
      %s11 = ssub.s32 256, 256
      %12 = vsyncadd [#allocation3], %s11
      %s13 = sshll.u32 [#allocation2], 4
      %s14 = int_to_ptr.vmem [resolvable:$true] %s13
      %19 = dma.hbm_to_vmem [thread:$0]  %s0, 256, %s14, [#allocation3], 128, 128, 8
    $region5: #{tpu_custom_call.1} parent=1 // pred_fallthru
      _
    // Predicated region
    $region6: #{tpu_custom_call.1} parent=1 // pred_check
      _
    $region7: #{tpu_custom_call.1} parent=1 // pred_check_branch
      %21 = sbr.rel (0) target = $region9
    $region8: #{tpu_custom_call.1} parent=1 // pred_region
      %22 = dma.done [#allocation3], 256
    $region9: #{tpu_custom_call.1} parent=1 // pred_fallthru
      _
    %v23 = vld [vmem:[#allocation2] sm:$0xff]
    %v24 = vld [vmem:[#allocation2 + $0x8] sm:$0xff]
    %s25 = smul.u32 0, 16
    %v26 = vlaneseq
    %v27 = vshrl.u32 %v26, 7
    %v28 = vadd.s32 %v27, 8
    %v29 = vstv %s25
    %v30 = vadd.s32 %v29, %v27
    %v31 = vadd.s32 %v29, %v28
    %vm32 = vcmp.lt.s32.totalorder %v30, 10
    %vm33 = vcmp.lt.s32.totalorder %v31, 10
    %v34 = vsel %vm32, 1, 0
    %v35 = vsel %vm33, 1, 0
    %vm36 = vcmp.eq.s32.totalorder %v34, 1
    %vm37 = vcmp.eq.s32.totalorder %v35, 1
    %v38 = vsel %vm36, %v23, 0.0
    %v39 = vsel %vm37, %v24, 0.0
    %v40 = vmul.f32 %v38, %v38
    %v41 = vmul.f32 %v39, %v39
    %42 = vadd.xlane.f32.xlu0 %v40
    %v43 = vpop.xlane.xlu0 %42
    %44 = vadd.xlane.f32.xlu0 %v41
    %v45 = vpop.xlane.xlu0 %44
    %v46 = vrsqrt.pop %v43
    %v47 = vrsqrt.pop %v45
    %v48 = vmin.f32 %v46, 1e+12
    %v49 = vmin.f32 %v47, 1e+12
    %v50 = vmul.f32 %v38, %v48
    %v51 = vmul.f32 %v39, %v49
    %52 = vst [vmem:[#allocation5] sm:$0xff] %v50
    %53 = vst [vmem:[#allocation5 + $0x8] sm:$0xff] %v51
    // Predicated region
    $region10: #{tpu_custom_call.1} parent=1 // pred_check
      _
    $region11: #{tpu_custom_call.1} parent=1 // pred_check_branch
      %55 = sbr.rel (0) target = $region13
    $region12: #{tpu_custom_call.1} parent=1 // pred_region
      %s57 = ssub.s32 256, 256
      %58 = vsyncadd [#allocation4], %s57
      %s59 = sshll.u32 [#allocation5], 4
      %s60 = int_to_ptr.vmem [resolvable:$true] %s59
      %65 = dma.vmem_to_hbm [thread:$0]  %s60, 256, %s1, [#allocation4], 128, 128, 8
    $region13: #{tpu_custom_call.1} parent=1 // pred_fallthru
      _
    // Predicated region
    $region14: #{tpu_custom_call.1} parent=1 // pred_check
      _
    $region15: #{tpu_custom_call.1} parent=1 // pred_check_branch
      %67 = sbr.rel (0) target = $region17
    $region16: #{tpu_custom_call.1} parent=1 // pred_region
      %68 = dma.done [#allocation4], 256
    $region17: #{tpu_custom_call.1} parent=1 // pred_fallthru
      _
    %69 = vsyncpa [#allocation3], 1
    %70 = vsyncpa [#allocation4], 1

</llo_original>
